<compile_context>
chip_gen: v6e
topology: v6e:2x2x1
jax: 0.10.0
libtpu: 0.0.40
codegen_flags: <defaults>
</compile_context>

<pallas_src>
import jax
import jax.numpy as jnp
from jax.experimental import pallas as pl
from jax.experimental.pallas import tpu as pltpu

LANES = 128
SUBLANES = 8
CHUNK_ROWS = 512                 # in-kernel fold chunk (256 KiB f32 temporaries)
MAX_BLOCK_ROWS = 8192            # 4 MiB per f32 input block
FORCE_SPLIT_ROWS = 2048          # force >=2 grid blocks above this (v7x has 2 TCs)
PIPELINE_BUDGET_BYTES = 24 << 20 # double-buffered input DMA budget (v7x-safe)


def _cdiv(a, b):
    return -(-a // b)


def _round_up(a, b):
    return _cdiv(a, b) * b


def _round_down(a, b):
    return (a // b) * b


def _fold_to_vreg(x):
    """Fold a (k*8, 128) f32 array to one (8, 128) vreg with VPU adds only."""
    return jnp.sum(x.reshape(-1, SUBLANES, LANES), axis=0)


def _make_kernel(block_rows, total_rows, has_w, ragged):
    """Build the per-block partial-sums kernel.

    block_rows, total_rows are static Python ints; `ragged` means the last grid
    block reads past `total_rows` and its garbage tail must be masked.
    """
    n_full = block_rows // CHUNK_ROWS
    rem = block_rows % CHUNK_ROWS

    def kernel(*refs):
        if has_w:
            pred_ref, gt_ref, mask_ref, w_ref, out_ref = refs
        else:
            pred_ref, gt_ref, mask_ref, out_ref = refs
            w_ref = None

        if ragged:
            i = pl.program_id(0)
            # valid rows inside this block (only the last block is partial)
            vb = jnp.minimum(total_rows - i * block_rows, block_rows)

        def chunk_terms(start, size, row_iota):
            sl = pl.ds(start, size)
            p = pred_ref[sl, :].astype(jnp.float32)
            g = gt_ref[sl, :].astype(jnp.float32)
            m = mask_ref[sl, :].astype(jnp.float32)
            if w_ref is not None:
                m = m * w_ref[sl, :].astype(jnp.float32)
            pm = p * m
            gm = g * m
            pgm = pm * g
            if ragged:
                # Mask garbage rows of the partial last block AFTER the
                # products so stale-VMEM NaN/Inf cannot leak into the sums.
                valid = row_iota < (vb - start)
                pm = jnp.where(valid, pm, 0.0)
                gm = jnp.where(valid, gm, 0.0)
                pgm = jnp.where(valid, pgm, 0.0)
            return _fold_to_vreg(pgm), _fold_to_vreg(pm), _fold_to_vreg(gm)

        acc = (jnp.zeros((SUBLANES, LANES), jnp.float32),
               jnp.zeros((SUBLANES, LANES), jnp.float32),
               jnp.zeros((SUBLANES, LANES), jnp.float32))

        if n_full > 0:
            row_iota = (jax.lax.broadcasted_iota(jnp.int32, (CHUNK_ROWS, LANES), 0)
                        if ragged else None)

            def body(c, a):
                start = pl.multiple_of(c * CHUNK_ROWS, CHUNK_ROWS)
                t0, t1, t2 = chunk_terms(start, CHUNK_ROWS, row_iota)
                return (a[0] + t0, a[1] + t1, a[2] + t2)

            acc = jax.lax.fori_loop(0, n_full, body, acc, unroll=True)

        if rem > 0:
            row_iota = (jax.lax.broadcasted_iota(jnp.int32, (rem, LANES), 0)
                        if ragged else None)
            t0, t1, t2 = chunk_terms(n_full * CHUNK_ROWS, rem, row_iota)
            acc = (acc[0] + t0, acc[1] + t1, acc[2] + t2)

        out_ref[0, 0] = acc[0]   # partial of sum(pred * gt * mask)
        out_ref[0, 1] = acc[1]   # partial of sum(pred * mask)
        out_ref[0, 2] = acc[2]   # partial of sum(gt * mask)

    return kernel


def dice_loss(pred, gt, mask, weights=None, eps=1e-6):
    assert pred.shape == gt.shape
    assert pred.shape == mask.shape
    has_w = weights is not None
    if has_w:
        assert weights.shape == mask.shape

    arrays = [pred, gt, mask] + ([weights] if has_w else [])
    n = int(pred.size)
    assert n > 0

    rows = _cdiv(n, LANES)

    # Block size: cap so double-buffered input DMA fits the pipeline budget
    # (v7x VMEM is only 64 MiB); keep blocks 32-row aligned (packed dtypes);
    # force >=2 blocks for big inputs so both v7x TensorCores stream HBM.
    itemsize_sum = sum(a.dtype.itemsize for a in arrays)
    cap = _round_down(PIPELINE_BUDGET_BYTES // (2 * LANES * itemsize_sum), 32)
    cap = max(32, min(MAX_BLOCK_ROWS, cap))

    if rows <= 256:
        # Tiny input: one block covering everything; round rows to whole vregs.
        rows = _round_up(rows, SUBLANES)
        block_rows = rows
    else:
        want = rows if rows <= FORCE_SPLIT_ROWS else _cdiv(rows, 2)
        block_rows = min(cap, _round_up(want, 32), _round_down(rows, 32))

    pad = rows * LANES - n   # <128 elems (or <1KiB on the tiny path); zeros are sum-neutral

    def prep(x):
        flat = jnp.ravel(x)                # native dtype; cast happens in-kernel
        if pad:
            flat = jnp.pad(flat, (0, pad))  # fuses with the relayout copy of the reshape
        return flat.reshape(rows, LANES)

    inputs = [prep(a) for a in arrays]

    grid_blocks = _cdiv(rows, block_rows)
    ragged = (rows % block_rows) != 0       # last block partially out of bounds

    kernel = _make_kernel(block_rows, rows, has_w, ragged)

    in_spec = pl.BlockSpec((block_rows, LANES), lambda i: (i, 0))
    out_spec = pl.BlockSpec((1, 3, SUBLANES, LANES), lambda i: (i, 0, 0, 0))

    pipeline_bytes = 2 * block_rows * LANES * itemsize_sum
    vmem_limit = int(min(48 << 20, max(32 << 20, pipeline_bytes + (12 << 20))))

    partials = pl.pallas_call(
        kernel,
        out_shape=jax.ShapeDtypeStruct((grid_blocks, 3, SUBLANES, LANES), jnp.float32),
        grid=(grid_blocks,),
        in_specs=[in_spec] * len(inputs),
        out_specs=out_spec,
        compiler_params=pltpu.CompilerParams(
            dimension_semantics=("parallel",),   # per-block partials -> megacore-splittable
            vmem_limit_bytes=vmem_limit),
    )(*inputs)

    # Tiny final reduction (G*3 vregs) done in plain JAX.
    sums = jnp.sum(partials, axis=(0, 2, 3))
    intersection = sums[0]
    union = sums[1] + sums[2] + eps
    return 1.0 - 2.0 * intersection / union


def dice_loss_ref(pred, gt, mask, weights=None, eps=1e-6):
    if weights is not None:
        mask = weights * mask
    p = pred.astype(jnp.float32)
    g = gt.astype(jnp.float32)
    m = mask.astype(jnp.float32)
    intersection = jnp.sum(p * g * m)
    union = jnp.sum(p * m) + jnp.sum(g * m) + eps
    return 1.0 - 2.0 * intersection / union


def _check(loss, ref, tag):
    loss_f, ref_f = float(loss), float(ref)
    # f32 accumulation; tolerance is adequate for these sizes.
    assert abs(loss_f - ref_f) < 1e-4, (tag, loss_f, ref_f)
    assert loss_f <= 1.0 + 1e-6, (tag, loss_f)


if __name__ == "__main__":
    key = jax.random.PRNGKey(0)
    k1, k2, k3, k4 = jax.random.split(key, 4)

    # Primary small test, NCHW as in the PyTorch module.
    B, C, H, W = 2, 4, 16, 16
    pred = jax.nn.sigmoid(jax.random.normal(k1, (B, C, H, W), jnp.float32))
    gt = (jax.random.uniform(k2, (B, C, H, W)) > 0.5).astype(jnp.float32)
    mask = (jax.random.uniform(k3, (B, C, H, W)) > 0.2).astype(jnp.float32)
    weights = jax.random.uniform(k4, (B, C, H, W), jnp.float32)

    loss = jax.block_until_ready(dice_loss(pred, gt, mask))
    _check(loss, dice_loss_ref(pred, gt, mask), "no_weights")

    loss_w = jax.block_until_ready(dice_loss(pred, gt, mask, weights=weights))
    _check(loss_w, dice_loss_ref(pred, gt, mask, weights=weights), "weights")

    # Ragged flat size (exercises the tiny-input 128-lane pad path).
    shp = (2, 3, 15, 17)
    pr = jax.nn.sigmoid(jax.random.normal(k1, shp, jnp.float32))
    gr = (jax.random.uniform(k2, shp) > 0.5).astype(jnp.float32)
    mr = (jax.random.uniform(k3, shp) > 0.2).astype(jnp.float32)
    loss_r = jax.block_until_ready(dice_loss(pr, gr, mr))
    _check(loss_r, dice_loss_ref(pr, gr, mr), "ragged_small")

    # Rows not a multiple of the block (exercises partial-block DMA + in-kernel
    # iota masking: rows=495 -> block=480 -> grid=2, last block 15 valid rows).
    shp_rb = (3, 5, 33, 128)
    prb = jax.nn.sigmoid(jax.random.normal(k1, shp_rb, jnp.float32))
    grb = (jax.random.uniform(k2, shp_rb) > 0.5).astype(jnp.float32)
    mrb = (jax.random.uniform(k3, shp_rb) > 0.2).astype(jnp.float32)
    loss_rb = jax.block_until_ready(dice_loss(prb, grb, mrb))
    _check(loss_rb, dice_loss_ref(prb, grb, mrb), "ragged_block")

    # Multi-block grid (exercises the "parallel" multi-tile path; grid of 2).
    shp2 = (4, 16, 64, 128)
    pb = jax.nn.sigmoid(jax.random.normal(k1, shp2, jnp.float32))
    gb = (jax.random.uniform(k2, shp2) > 0.5).astype(jnp.float32)
    mb = (jax.random.uniform(k3, shp2) > 0.2).astype(jnp.float32)
    loss_b = jax.block_until_ready(dice_loss(pb, gb, mb))
    _check(loss_b, dice_loss_ref(pb, gb, mb), "multiblock")

    print("KERNEL_OK")
</pallas_src>

<mosaic_0001>
module attributes {stable_mosaic.version = 11 : i64} {
  func.func @kernel(%arg0: i32, %arg1: memref<16x128xf32, #tpu.memory_space<vmem>>, %arg2: memref<16x128xf32, #tpu.memory_space<vmem>>, %arg3: memref<16x128xf32, #tpu.memory_space<vmem>>, %arg4: memref<1x3x8x128xf32, #tpu.memory_space<vmem>>) attributes {dimension_semantics = [#tpu.dimension_semantics<parallel>], iteration_bounds = array<i64: 1>, scalar_prefetch = 0 : i64, scratch_operands = 0 : i64, tpu.core_type = #tpu.core_type<tc>, window_params = [{transform_indices = @transform_0, window_bounds = array<i64: 16, 128>}, {transform_indices = @transform_1, window_bounds = array<i64: 16, 128>}, {transform_indices = @transform_2, window_bounds = array<i64: 16, 128>}, {transform_indices = @transform_3, window_bounds = array<i64: 1, 3, 8, 128>}]} {
    %cst = arith.constant 0.000000e+00 : f32
    %0 = vector.broadcast %cst : f32 to vector<8x128xf32>
    %cst_0 = arith.constant 0.000000e+00 : f32
    %1 = vector.broadcast %cst_0 : f32 to vector<8x128xf32>
    %cst_1 = arith.constant 0.000000e+00 : f32
    %2 = vector.broadcast %cst_1 : f32 to vector<8x128xf32>
    %c0 = arith.constant 0 : index
    %c0_2 = arith.constant 0 : index
    %3 = vector.load %arg1[%c0, %c0_2] : memref<16x128xf32, #tpu.memory_space<vmem>>, vector<16x128xf32>
    %c0_3 = arith.constant 0 : index
    %c0_4 = arith.constant 0 : index
    %4 = vector.load %arg2[%c0_3, %c0_4] : memref<16x128xf32, #tpu.memory_space<vmem>>, vector<16x128xf32>
    %c0_5 = arith.constant 0 : index
    %c0_6 = arith.constant 0 : index
    %5 = vector.load %arg3[%c0_5, %c0_6] : memref<16x128xf32, #tpu.memory_space<vmem>>, vector<16x128xf32>
    %6 = arith.mulf %3, %5 : vector<16x128xf32>
    %7 = arith.mulf %4, %5 : vector<16x128xf32>
    %8 = arith.mulf %6, %4 : vector<16x128xf32>
    %9 = vector.shape_cast %8 : vector<16x128xf32> to vector<2x8x128xf32>
    %cst_7 = arith.constant dense<0.000000e+00> : vector<8x128xf32>
    %10 = vector.multi_reduction <add>, %9, %cst_7 [0] : vector<2x8x128xf32> to vector<8x128xf32>
    %11 = vector.shape_cast %6 : vector<16x128xf32> to vector<2x8x128xf32>
    %cst_8 = arith.constant dense<0.000000e+00> : vector<8x128xf32>
    %12 = vector.multi_reduction <add>, %11, %cst_8 [0] : vector<2x8x128xf32> to vector<8x128xf32>
    %13 = vector.shape_cast %7 : vector<16x128xf32> to vector<2x8x128xf32>
    %cst_9 = arith.constant dense<0.000000e+00> : vector<8x128xf32>
    %14 = vector.multi_reduction <add>, %13, %cst_9 [0] : vector<2x8x128xf32> to vector<8x128xf32>
    %15 = arith.addf %0, %10 : vector<8x128xf32>
    %16 = arith.addf %1, %12 : vector<8x128xf32>
    %17 = arith.addf %2, %14 : vector<8x128xf32>
    %c0_10 = arith.constant 0 : index
    %c0_11 = arith.constant 0 : index
    %c0_12 = arith.constant 0 : index
    %c0_13 = arith.constant 0 : index
    %18 = vector.load %arg4[%c0_10, %c0_11, %c0_12, %c0_13] : memref<1x3x8x128xf32, #tpu.memory_space<vmem>>, vector<1x1x8x128xf32>
    %19 = vector.shape_cast %18 : vector<1x1x8x128xf32> to vector<8x128xf32>
    %20 = vector.shape_cast %15 : vector<8x128xf32> to vector<1x1x8x128xf32>
    tpu.vector_store %arg4[%c0_10, %c0_11, %c0_12, %c0_13], %20 {strides = array<i32>} : memref<1x3x8x128xf32, #tpu.memory_space<vmem>>, vector<1x1x8x128xf32>,
    %c0_14 = arith.constant 0 : index
    %c1 = arith.constant 1 : index
    %c0_15 = arith.constant 0 : index
    %c0_16 = arith.constant 0 : index
    %21 = vector.load %arg4[%c0_14, %c1, %c0_15, %c0_16] : memref<1x3x8x128xf32, #tpu.memory_space<vmem>>, vector<1x1x8x128xf32>
    %22 = vector.shape_cast %21 : vector<1x1x8x128xf32> to vector<8x128xf32>
    %23 = vector.shape_cast %16 : vector<8x128xf32> to vector<1x1x8x128xf32>
    tpu.vector_store %arg4[%c0_14, %c1, %c0_15, %c0_16], %23 {strides = array<i32>} : memref<1x3x8x128xf32, #tpu.memory_space<vmem>>, vector<1x1x8x128xf32>,
    %c0_17 = arith.constant 0 : index
    %c2 = arith.constant 2 : index
    %c0_18 = arith.constant 0 : index
    %c0_19 = arith.constant 0 : index
    %24 = vector.load %arg4[%c0_17, %c2, %c0_18, %c0_19] : memref<1x3x8x128xf32, #tpu.memory_space<vmem>>, vector<1x1x8x128xf32>
    %25 = vector.shape_cast %24 : vector<1x1x8x128xf32> to vector<8x128xf32>
    %26 = vector.shape_cast %17 : vector<8x128xf32> to vector<1x1x8x128xf32>
    tpu.vector_store %arg4[%c0_17, %c2, %c0_18, %c0_19], %26 {strides = array<i32>} : memref<1x3x8x128xf32, #tpu.memory_space<vmem>>, vector<1x1x8x128xf32>,
    return
  }
  func.func @transform_0(%arg0: i32) -> (i32, i32) {
    %c0_i32 = arith.constant 0 : i32
    %c0_i32_0 = arith.constant 0 : i32
    return %arg0, %c0_i32 : i32, i32
  }
  func.func @transform_1(%arg0: i32) -> (i32, i32) {
    %c0_i32 = arith.constant 0 : i32
    %c0_i32_0 = arith.constant 0 : i32
    return %arg0, %c0_i32 : i32, i32
  }
  func.func @transform_2(%arg0: i32) -> (i32, i32) {
    %c0_i32 = arith.constant 0 : i32
    %c0_i32_0 = arith.constant 0 : i32
    return %arg0, %c0_i32 : i32, i32
  }
  func.func @transform_3(%arg0: i32) -> (i32, i32, i32, i32) {
    %c0_i32 = arith.constant 0 : i32
    %c0_i32_0 = arith.constant 0 : i32
    %c0_i32_1 = arith.constant 0 : i32
    %c0_i32_2 = arith.constant 0 : i32
    return %arg0, %c0_i32, %c0_i32_0, %c0_i32_1 : i32, i32, i32, i32
  }
}

</mosaic_0001>

<llo_original>
// kernel: tpu_custom_call.1
$region0: #{tpu_custom_call.1}
  #allocation0 [shape = 'u32[]', space=smem, size = 0x4, offset = 0x4, fixed_abs, tag = 'smem constant byte address 0x4 - core index']
  #allocation1 [shape = 'u32[144,128]{1,0:T(1,128)}', space=vmem, size = 0x12000, scoped, tag = 'internal scratch']
  %s0 = inlined_call_operand.hbm [shape: f32[16,128], index: 0, kind: input, shape index: {}]
  %s1 = inlined_call_operand.hbm [shape: f32[16,128], index: 1, kind: input, shape index: {}]
  %s2 = inlined_call_operand.hbm [shape: f32[16,128], index: 2, kind: input, shape index: {}]
  %s3 = inlined_call_operand.hbm [shape: f32[1,3,8,128], index: 3, kind: output, shape index: {}]
  %s4 = sld [smem:[#allocation0]]
  $region34: #{tpu_custom_call.1} parent=0
    _
  %s6 = ssub.s32 1, %s4
  %s7 = scalar_select 0, %s6, %s4
  $region1: #{tpu_custom_call.1} parent=0
    #allocation2 [shape = 'u8[8192]{0}', space=vmem, size = 0x2000, scoped, tag = 'input window, operand 0, single buffered']
    #allocation3 [shape = 's32[1]{0}', space=sflag, size = 0x4, scoped, tag = 'scoped memory for tpu_custom_call.1']
    #allocation4 [shape = 's32[1]{0}', space=sflag, size = 0x4, scoped, tag = 'scoped memory for tpu_custom_call.1']
    #allocation5 [shape = 'u8[8192]{0}', space=vmem, size = 0x2000, scoped, tag = 'input window, operand 1, single buffered']
    #allocation6 [shape = 's32[1]{0}', space=sflag, size = 0x4, scoped, tag = 'scoped memory for tpu_custom_call.1']
    #allocation7 [shape = 'u8[8192]{0}', space=vmem, size = 0x2000, scoped, tag = 'input window, operand 2, single buffered']
    #allocation8 [shape = 'u8[12288]{0}', space=vmem, size = 0x3000, scoped, tag = 'output window, operand 0, single buffered']
    %8 = vsyncpa [#allocation3], 0
    %9 = vsyncpa [#allocation6], 0
    %10 = vsyncpa [#allocation4], 0
    // Predicated region
    $region2: #{tpu_custom_call.1} parent=1 // pred_check
      _
    $region3: #{tpu_custom_call.1} parent=1 // pred_check_branch
      %12 = sbr.rel (0) target = $region5
    $region4: #{tpu_custom_call.1} parent=1 // pred_region
      %s14 = ssub.s32 256, 256
      %15 = vsyncadd [#allocation3], %s14
      %s16 = sshll.u32 [#allocation2], 4
      %s17 = int_to_ptr.vmem [resolvable:$true] %s16
      %22 = dma.hbm_to_vmem [thread:$0]  %s0, 256, %s17, [#allocation3], 128, 128, 8
    $region5: #{tpu_custom_call.1} parent=1 // pred_fallthru
      _
    // Predicated region
    $region6: #{tpu_custom_call.1} parent=1 // pred_check
      _
    $region7: #{tpu_custom_call.1} parent=1 // pred_check_branch
      %24 = sbr.rel (0) target = $region9
    $region8: #{tpu_custom_call.1} parent=1 // pred_region
      %s26 = ssub.s32 256, 256
      %27 = vsyncadd [#allocation6], %s26
      %s28 = sshll.u32 [#allocation5], 4
      %s29 = int_to_ptr.vmem [resolvable:$true] %s28
      %34 = dma.hbm_to_vmem [thread:$0]  %s1, 256, %s29, [#allocation6], 128, 128, 8
    $region9: #{tpu_custom_call.1} parent=1 // pred_fallthru
      _
    // Predicated region
    $region10: #{tpu_custom_call.1} parent=1 // pred_check
      _
    $region11: #{tpu_custom_call.1} parent=1 // pred_check_branch
      %36 = sbr.rel (0) target = $region13
    $region12: #{tpu_custom_call.1} parent=1 // pred_region
      %s38 = ssub.s32 256, 256
      %39 = vsyncadd [#allocation6], %s38
      %s40 = sshll.u32 [#allocation7], 4
      %s41 = int_to_ptr.vmem [resolvable:$true] %s40
      %46 = dma.hbm_to_vmem [thread:$0]  %s2, 256, %s41, [#allocation6], 128, 128, 8
    $region13: #{tpu_custom_call.1} parent=1 // pred_fallthru
      _
    // Predicated region
    $region14: #{tpu_custom_call.1} parent=1 // pred_check
      _
    $region15: #{tpu_custom_call.1} parent=1 // pred_check_branch
      %48 = sbr.rel (0) target = $region17
    $region16: #{tpu_custom_call.1} parent=1 // pred_region
      %49 = dma.done [#allocation3], 256
    $region17: #{tpu_custom_call.1} parent=1 // pred_fallthru
      _
    // Predicated region
    $region18: #{tpu_custom_call.1} parent=1 // pred_check
      _
    $region19: #{tpu_custom_call.1} parent=1 // pred_check_branch
      %51 = sbr.rel (0) target = $region21
    $region20: #{tpu_custom_call.1} parent=1 // pred_region
      %52 = dma.done [#allocation6], 256
    $region21: #{tpu_custom_call.1} parent=1 // pred_fallthru
      _
    // Predicated region
    $region22: #{tpu_custom_call.1} parent=1 // pred_check
      _
    $region23: #{tpu_custom_call.1} parent=1 // pred_check_branch
      %54 = sbr.rel (0) target = $region25
    $region24: #{tpu_custom_call.1} parent=1 // pred_region
      %55 = dma.done [#allocation6], 256
    $region25: #{tpu_custom_call.1} parent=1 // pred_fallthru
      _
    %v56 = vld [vmem:[#allocation2] sm:$0xff]
    %v57 = vld [vmem:[#allocation2 + $0x8] sm:$0xff]
    %v58 = vld [vmem:[#allocation5] sm:$0xff]
    %v59 = vld [vmem:[#allocation5 + $0x8] sm:$0xff]
    %v60 = vld [vmem:[#allocation7] sm:$0xff]
    %v61 = vld [vmem:[#allocation7 + $0x8] sm:$0xff]
    %v62 = vmul.f32 %v56, %v60
    %v63 = vmul.f32 %v57, %v61
    %v64 = vmul.f32 %v58, %v60
    %v65 = vmul.f32 %v59, %v61
    %v66 = vmul.f32 %v62, %v58
    %v67 = vmul.f32 %v63, %v59
    %v68 = vadd.f32 %v66, %v67
    %v69 = vadd.f32 %v62, %v63
    %v70 = vadd.f32 %v64, %v65
    %v71 = vadd.f32 %v68, 0.0
    %v72 = vadd.f32 %v69, 0.0
    %v73 = vadd.f32 %v70, 0.0
    %74 = vst [vmem:[#allocation8] sm:$0xff] %v71
    %s75 = scalar_lea.vmem [#allocation8], 8
    %76 = vst [vmem:[%s75] sm:$0xff] %v72
    %s77 = scalar_lea.vmem [#allocation8], 16
    %78 = vst [vmem:[%s77] sm:$0xff] %v73
    // Predicated region
    $region26: #{tpu_custom_call.1} parent=1 // pred_check
      _
    $region27: #{tpu_custom_call.1} parent=1 // pred_check_branch
      %80 = sbr.rel (0) target = $region29
    $region28: #{tpu_custom_call.1} parent=1 // pred_region
      %s82 = ssub.s32 384, 384
      %83 = vsyncadd [#allocation4], %s82
      %s84 = sshll.u32 [#allocation8], 4
      %s85 = int_to_ptr.vmem [resolvable:$true] %s84
      %90 = dma.vmem_to_hbm [thread:$0]  %s85, 384, %s3, [#allocation4], 128, 128, 8
    $region29: #{tpu_custom_call.1} parent=1 // pred_fallthru
      _
    // Predicated region
    $region30: #{tpu_custom_call.1} parent=1 // pred_check
      _
    $region31: #{tpu_custom_call.1} parent=1 // pred_check_branch
      %92 = sbr.rel (0) target = $region33
    $region32: #{tpu_custom_call.1} parent=1 // pred_region
      %93 = dma.done [#allocation4], 384
    $region33: #{tpu_custom_call.1} parent=1 // pred_fallthru
      _
    %94 = vsyncpa [#allocation3], 1
    %95 = vsyncpa [#allocation6], 1
    %96 = vsyncpa [#allocation4], 1

</llo_original>
